<compile_context>
chip_gen: v6e
topology: v6e:2x2x1
jax: 0.10.0
libtpu: 0.0.40
codegen_flags: <defaults>
</compile_context>

<pallas_src>
import jax
import jax.numpy as jnp
from jax.experimental import pallas as pl
from jax.experimental.pallas import tpu as pltpu

# ----- configuration (small, consistent with the module) ---------------------
B, N = 2, 16                  # batch, points per batch
IDIM = 3                      # leaf layer requires idim == 3
ODIM = 40                     # output feature dim
EDIM = 8                      # extra-feature input dim
PD = int(0.6 * ODIM + 0.5)    # 24  (point branch output dim)
ED = ODIM - PD                # 16  (extra branch output dim)
H1P = 2 * PD                  # 48  (point branch hidden dim)
H1E = 2 * ED                  # 32  (extra branch hidden dim)
RELU_W = 0.005                # PReLU init (relu_weight) -- baked as constant
EPS = 1e-5                    # BatchNorm eps
PAD = 128                     # lane width: all matmul dims padded to 128
NVEC = 8                      # rows of packed bias/gamma/beta block (6 used)


# ----------------------------- kernel ----------------------------------------
def encoder_leaf_kernel(x_ref, p_ref, out_ref):
    """Fused leaf forward.

    x_ref  : (M, 128)  [ last(3) | extra(8) | zeros ]
    p_ref  : (264, 128) packed params:
             rows   0..127 : W1 block-diag  (wp1 -> cols 0..47 | we1 -> cols 48..79)
             rows 128..255 : W2 block-diag  (wp2 -> cols 0..23 | we2 -> cols 24..39)
             rows 256..263 : b1, gamma1, beta1, b2, gamma2, beta2, 0, 0
    out_ref: (M, 128)  columns 0..39 hold concat([point, extra], -1); rest are 0.
    """
    x = x_ref[...].astype(jnp.float32)
    w1 = p_ref[0:PAD, :]                               # (128, 128)
    w2 = p_ref[PAD:2 * PAD, :]                         # (128, 128)
    vecs = p_ref[2 * PAD:2 * PAD + NVEC, :]            # (8, 128), single load
    b1, g1, bt1 = vecs[0:1], vecs[1:2], vecs[2:3]
    b2, g2, bt2 = vecs[3:4], vecs[4:5], vecs[5:6]

    inv_m = 1.0 / x.shape[0]                           # static trip count

    def bn(h, gamma, beta):
        # Single-pass batch statistics: sum & sum-of-squares (one XLU
        # reduction each); biased variance == BatchNorm1d training mode.
        s = jnp.sum(h, axis=0, keepdims=True)
        ss = jnp.sum(h * h, axis=0, keepdims=True)
        mu = s * inv_m
        var = jnp.maximum(ss * inv_m - mu * mu, 0.0)
        return (h - mu) * jax.lax.rsqrt(var + EPS) * gamma + beta

    # Layer 1 of both MLPs (fused, block-diagonal): Linear -> BN -> PReLU.
    h = jnp.dot(x, w1, preferred_element_type=jnp.float32) + b1
    h = bn(h, g1, bt1)
    h = jnp.where(h > 0, h, RELU_W * h)                # PReLU, alpha baked

    # Layer 2 of both MLPs (fused): Linear -> BN (no activation on last FC).
    h = jnp.dot(h, w2, preferred_element_type=jnp.float32) + b2
    out_ref[...] = bn(h, g2, bt2)                      # lane-dense slab store


# ----------------------------- params ----------------------------------------
def init_params(key):
    """Deterministic parameter init (PyTorch-like uniform(-1/sqrt(fan_in), +))."""
    ks = jax.random.split(key, 4)

    def linear(k, fan_in, fan_out):
        bound = 1.0 / (fan_in ** 0.5)
        kw, kb = jax.random.split(k)
        # stored as (in, out): equivalent to torch's x @ W.T with W (out, in)
        w = jax.random.uniform(kw, (fan_in, fan_out), jnp.float32, -bound, bound)
        b = jax.random.uniform(kb, (1, fan_out), jnp.float32, -bound, bound)
        return w, b

    wp1, bp1 = linear(ks[0], IDIM, H1P)
    wp2, bp2 = linear(ks[1], H1P, PD)
    we1, be1 = linear(ks[2], EDIM, H1E)
    we2, be2 = linear(ks[3], H1E, ED)

    ones = lambda n: jnp.ones((1, n), jnp.float32)    # BN gamma (fresh module)
    zeros = lambda n: jnp.zeros((1, n), jnp.float32)  # BN beta  (fresh module)

    # PReLU alpha is baked into the kernel as RELU_W (fresh-module value).
    return dict(
        wp1=wp1, bp1=bp1, gp1=ones(H1P), btp1=zeros(H1P),
        wp2=wp2, bp2=bp2, gp2=ones(PD), btp2=zeros(PD),
        we1=we1, be1=be1, ge1=ones(H1E), bte1=zeros(H1E),
        we2=we2, be2=be2, ge2=ones(ED), bte2=zeros(ED),
    )


def pack_params(p):
    """Pack all parameters into one 128-lane-aligned f32 slab: (264, 128)."""
    w1 = jnp.zeros((PAD, PAD), jnp.float32)
    w1 = w1.at[:IDIM, :H1P].set(p['wp1'])
    w1 = w1.at[IDIM:IDIM + EDIM, H1P:H1P + H1E].set(p['we1'])

    w2 = jnp.zeros((PAD, PAD), jnp.float32)
    w2 = w2.at[:H1P, :PD].set(p['wp2'])
    w2 = w2.at[H1P:H1P + H1E, PD:PD + ED].set(p['we2'])

    def vec_row(pv, ev, off_e, fill=0.0):
        r = jnp.full((PAD,), fill, jnp.float32)
        r = r.at[:pv.shape[-1]].set(pv.reshape(-1))
        r = r.at[off_e:off_e + ev.shape[-1]].set(ev.reshape(-1))
        return r

    rows = jnp.stack([
        vec_row(p['bp1'], p['be1'], H1P),                # bias 1
        vec_row(p['gp1'], p['ge1'], H1P, fill=1.0),      # gamma 1
        vec_row(p['btp1'], p['bte1'], H1P),              # beta 1
        vec_row(p['bp2'], p['be2'], PD),                 # bias 2
        vec_row(p['gp2'], p['ge2'], PD, fill=1.0),       # gamma 2
        vec_row(p['btp2'], p['bte2'], PD),               # beta 2
        jnp.zeros((PAD,), jnp.float32),
        jnp.zeros((PAD,), jnp.float32),
    ])                                                   # (8, 128)
    return jnp.concatenate([w1, w2, rows], axis=0)       # (264, 128)


# ----------------------------- wrapper ----------------------------------------
@jax.jit
def encoder_layer_leaf(last, extra, packed):
    b, n, _ = last.shape
    m = b * n
    assert m % 8 == 0, "row count must be sublane-aligned for this toy kernel"
    # Concatenate point + extra features once, pad to 128 lanes (cheap XLA).
    x = jnp.concatenate([last.reshape(m, IDIM), extra.reshape(m, EDIM)], axis=-1)
    x = jnp.pad(x, ((0, 0), (0, PAD - (IDIM + EDIM))))

    out = pl.pallas_call(
        encoder_leaf_kernel,
        out_shape=jax.ShapeDtypeStruct((m, PAD), jnp.float32),
        grid=(1,),
        in_specs=[pl.BlockSpec((m, PAD), lambda i: (0, 0)),
                  pl.BlockSpec((2 * PAD + NVEC, PAD), lambda i: (0, 0))],
        out_specs=pl.BlockSpec((m, PAD), lambda i: (0, 0)),
        compiler_params=pltpu.CompilerParams(
            dimension_semantics=("arbitrary",)),
    )(x, packed)
    # Lane-dense slab in the kernel; slice back the real ODIM=40 columns here.
    return out[:, :ODIM].reshape(b, n, ODIM)


# ----------------------------- pure-JAX reference -----------------------------
def reference_leaf(last, extra, p):
    """Plain-JAX mirror of EncoderLayer('leaf').forward in training mode."""
    b, n, _ = last.shape
    m = b * n

    def bn(h, gamma, beta):
        mu = jnp.mean(h, axis=0, keepdims=True)
        var = jnp.mean((h - mu) ** 2, axis=0, keepdims=True)   # biased var
        return (h - mu) / jnp.sqrt(var + EPS) * gamma + beta

    def prelu(h):
        return jnp.where(h > 0, h, RELU_W * h)

    xp = last.reshape(m, IDIM)
    xe = extra.reshape(m, EDIM)
    hp = prelu(bn(xp @ p['wp1'] + p['bp1'], p['gp1'], p['btp1']))
    hp = bn(hp @ p['wp2'] + p['bp2'], p['gp2'], p['btp2'])
    he = prelu(bn(xe @ p['we1'] + p['be1'], p['ge1'], p['bte1']))
    he = bn(he @ p['we2'] + p['be2'], p['ge2'], p['bte2'])
    return jnp.concatenate([hp, he], axis=-1).reshape(b, n, ODIM)


# ----------------------------- main -------------------------------------------
if __name__ == "__main__":
    key = jax.random.PRNGKey(0)
    kx, ke, kp = jax.random.split(key, 3)
    last = jax.random.normal(kx, (B, N, IDIM), jnp.float32)    # points
    extra = jax.random.normal(ke, (B, N, EDIM), jnp.float32)   # extra features

    params = init_params(kp)
    packed = pack_params(params)                               # one param DMA

    out = encoder_layer_leaf(last, extra, packed)
    jax.block_until_ready(out)
    assert out.shape == (B, N, ODIM), out.shape
    assert bool(jnp.all(jnp.isfinite(out)))

    # Correctness vs. pure-JAX reference of the PyTorch forward.
    ref = reference_leaf(last, extra, params)
    max_err = float(jnp.max(jnp.abs(out - ref)))
    assert max_err < 1e-2, f"kernel/reference mismatch: max abs err {max_err}"

    print("KERNEL_OK")
</pallas_src>

<mosaic_0001>
module attributes {stable_mosaic.version = 11 : i64} {
  func.func @encoder_leaf_kernel(%arg0: i32, %arg1: memref<32x128xf32, #tpu.memory_space<vmem>>, %arg2: memref<264x128xf32, #tpu.memory_space<vmem>>, %arg3: memref<32x128xf32, #tpu.memory_space<vmem>>) attributes {dimension_semantics = [#tpu.dimension_semantics<arbitrary>], iteration_bounds = array<i64: 1>, scalar_prefetch = 0 : i64, scratch_operands = 0 : i64, tpu.core_type = #tpu.core_type<tc>, window_params = [{pipeline_mode = #tpu.pipeline_mode<synchronous>, transform_indices = @transform_0, window_bounds = array<i64: 32, 128>}, {pipeline_mode = #tpu.pipeline_mode<synchronous>, transform_indices = @transform_1, window_bounds = array<i64: 264, 128>}, {pipeline_mode = #tpu.pipeline_mode<synchronous>, transform_indices = @transform_2, window_bounds = array<i64: 32, 128>}]} {
    %c0 = arith.constant 0 : index
    %c0_0 = arith.constant 0 : index
    %0 = vector.load %arg1[%c0, %c0_0] : memref<32x128xf32, #tpu.memory_space<vmem>>, vector<32x128xf32>
    %c0_1 = arith.constant 0 : index
    %c0_2 = arith.constant 0 : index
    %1 = vector.load %arg2[%c0_1, %c0_2] : memref<264x128xf32, #tpu.memory_space<vmem>>, vector<128x128xf32>
    %c128 = arith.constant 128 : index
    %c0_3 = arith.constant 0 : index
    %2 = vector.load %arg2[%c128, %c0_3] : memref<264x128xf32, #tpu.memory_space<vmem>>, vector<128x128xf32>
    %c256 = arith.constant 256 : index
    %c0_4 = arith.constant 0 : index
    %3 = vector.load %arg2[%c256, %c0_4] : memref<264x128xf32, #tpu.memory_space<vmem>>, vector<8x128xf32>
    %4 = vector.extract_strided_slice %3 {offsets = [0, 0], sizes = [1, 128], strides = [1, 1]} : vector<8x128xf32> to vector<1x128xf32>
    %5 = vector.extract_strided_slice %3 {offsets = [1, 0], sizes = [1, 128], strides = [1, 1]} : vector<8x128xf32> to vector<1x128xf32>
    %6 = vector.extract_strided_slice %3 {offsets = [2, 0], sizes = [1, 128], strides = [1, 1]} : vector<8x128xf32> to vector<1x128xf32>
    %7 = vector.extract_strided_slice %3 {offsets = [3, 0], sizes = [1, 128], strides = [1, 1]} : vector<8x128xf32> to vector<1x128xf32>
    %8 = vector.extract_strided_slice %3 {offsets = [4, 0], sizes = [1, 128], strides = [1, 1]} : vector<8x128xf32> to vector<1x128xf32>
    %9 = vector.extract_strided_slice %3 {offsets = [5, 0], sizes = [1, 128], strides = [1, 1]} : vector<8x128xf32> to vector<1x128xf32>
    %cst = arith.constant dense<0.000000e+00> : vector<32x128xf32>
    %10 = tpu.matmul %0, %1, %cst {dimension_numbers = #tpu.dot_dimension_numbers<[1], [0], [0], [1], [0, 0, 1, 1], [], []>} : vector<32x128xf32>, vector<128x128xf32>, vector<32x128xf32> -> vector<32x128xf32>
    %11 = vector.broadcast %4 : vector<1x128xf32> to vector<32x128xf32>
    %12 = arith.addf %10, %11 : vector<32x128xf32>
    %cst_5 = arith.constant dense<0.000000e+00> : vector<128xf32>
    %13 = vector.multi_reduction <add>, %12, %cst_5 [0] : vector<32x128xf32> to vector<128xf32>
    %14 = vector.shape_cast %13 : vector<128xf32> to vector<1x128xf32>
    %15 = arith.mulf %12, %12 : vector<32x128xf32>
    %cst_6 = arith.constant dense<0.000000e+00> : vector<128xf32>
    %16 = vector.multi_reduction <add>, %15, %cst_6 [0] : vector<32x128xf32> to vector<128xf32>
    %17 = vector.shape_cast %16 : vector<128xf32> to vector<1x128xf32>
    %cst_7 = arith.constant 3.125000e-02 : f32
    %18 = vector.broadcast %cst_7 : f32 to vector<1x128xf32>
    %19 = arith.mulf %14, %18 : vector<1x128xf32>
    %cst_8 = arith.constant 3.125000e-02 : f32
    %20 = vector.broadcast %cst_8 : f32 to vector<1x128xf32>
    %21 = arith.mulf %17, %20 : vector<1x128xf32>
    %22 = arith.mulf %19, %19 : vector<1x128xf32>
    %23 = arith.subf %21, %22 : vector<1x128xf32>
    %cst_9 = arith.constant 0.000000e+00 : f32
    %24 = vector.broadcast %cst_9 : f32 to vector<1x128xf32>
    %25 = arith.maximumf %23, %24 : vector<1x128xf32>
    %26 = vector.broadcast %19 : vector<1x128xf32> to vector<32x128xf32>
    %27 = arith.subf %12, %26 : vector<32x128xf32>
    %cst_10 = arith.constant 9.99999974E-6 : f32
    %28 = vector.broadcast %cst_10 : f32 to vector<1x128xf32>
    %29 = arith.addf %25, %28 : vector<1x128xf32>
    %30 = math.rsqrt %29 : vector<1x128xf32>
    %31 = vector.broadcast %30 : vector<1x128xf32> to vector<32x128xf32>
    %32 = arith.mulf %27, %31 : vector<32x128xf32>
    %33 = vector.broadcast %5 : vector<1x128xf32> to vector<32x128xf32>
    %34 = arith.mulf %32, %33 : vector<32x128xf32>
    %35 = vector.broadcast %6 : vector<1x128xf32> to vector<32x128xf32>
    %36 = arith.addf %34, %35 : vector<32x128xf32>
    %cst_11 = arith.constant 0.000000e+00 : f32
    %37 = vector.broadcast %cst_11 : f32 to vector<32x128xf32>
    %38 = arith.cmpf ogt, %36, %37 : vector<32x128xf32>
    %cst_12 = arith.constant 5.000000e-03 : f32
    %39 = vector.broadcast %cst_12 : f32 to vector<32x128xf32>
    %40 = arith.mulf %39, %36 : vector<32x128xf32>
    %41 = arith.select %38, %36, %40 : vector<32x128xi1>, vector<32x128xf32>
    %cst_13 = arith.constant dense<0.000000e+00> : vector<32x128xf32>
    %42 = tpu.matmul %41, %2, %cst_13 {dimension_numbers = #tpu.dot_dimension_numbers<[1], [0], [0], [1], [0, 0, 1, 1], [], []>} : vector<32x128xf32>, vector<128x128xf32>, vector<32x128xf32> -> vector<32x128xf32>
    %43 = vector.broadcast %7 : vector<1x128xf32> to vector<32x128xf32>
    %44 = arith.addf %42, %43 : vector<32x128xf32>
    %cst_14 = arith.constant dense<0.000000e+00> : vector<128xf32>
    %45 = vector.multi_reduction <add>, %44, %cst_14 [0] : vector<32x128xf32> to vector<128xf32>
    %46 = vector.shape_cast %45 : vector<128xf32> to vector<1x128xf32>
    %47 = arith.mulf %44, %44 : vector<32x128xf32>
    %cst_15 = arith.constant dense<0.000000e+00> : vector<128xf32>
    %48 = vector.multi_reduction <add>, %47, %cst_15 [0] : vector<32x128xf32> to vector<128xf32>
    %49 = vector.shape_cast %48 : vector<128xf32> to vector<1x128xf32>
    %cst_16 = arith.constant 3.125000e-02 : f32
    %50 = vector.broadcast %cst_16 : f32 to vector<1x128xf32>
    %51 = arith.mulf %46, %50 : vector<1x128xf32>
    %cst_17 = arith.constant 3.125000e-02 : f32
    %52 = vector.broadcast %cst_17 : f32 to vector<1x128xf32>
    %53 = arith.mulf %49, %52 : vector<1x128xf32>
    %54 = arith.mulf %51, %51 : vector<1x128xf32>
    %55 = arith.subf %53, %54 : vector<1x128xf32>
    %cst_18 = arith.constant 0.000000e+00 : f32
    %56 = vector.broadcast %cst_18 : f32 to vector<1x128xf32>
    %57 = arith.maximumf %55, %56 : vector<1x128xf32>
    %58 = vector.broadcast %51 : vector<1x128xf32> to vector<32x128xf32>
    %59 = arith.subf %44, %58 : vector<32x128xf32>
    %cst_19 = arith.constant 9.99999974E-6 : f32
    %60 = vector.broadcast %cst_19 : f32 to vector<1x128xf32>
    %61 = arith.addf %57, %60 : vector<1x128xf32>
    %62 = math.rsqrt %61 : vector<1x128xf32>
    %63 = vector.broadcast %62 : vector<1x128xf32> to vector<32x128xf32>
    %64 = arith.mulf %59, %63 : vector<32x128xf32>
    %65 = vector.broadcast %8 : vector<1x128xf32> to vector<32x128xf32>
    %66 = arith.mulf %64, %65 : vector<32x128xf32>
    %67 = vector.broadcast %9 : vector<1x128xf32> to vector<32x128xf32>
    %68 = arith.addf %66, %67 : vector<32x128xf32>
    %c0_20 = arith.constant 0 : index
    %c0_21 = arith.constant 0 : index
    %69 = vector.load %arg3[%c0_20, %c0_21] : memref<32x128xf32, #tpu.memory_space<vmem>>, vector<32x128xf32>
    tpu.vector_store %arg3[%c0_20, %c0_21], %68 {strides = array<i32>} : memref<32x128xf32, #tpu.memory_space<vmem>>, vector<32x128xf32>,
    return
  }
  func.func @transform_0(%arg0: i32) -> (i32, i32) {
    %c0_i32 = arith.constant 0 : i32
    %c0_i32_0 = arith.constant 0 : i32
    %c0_i32_1 = arith.constant 0 : i32
    return %c0_i32, %c0_i32_0 : i32, i32
  }
  func.func @transform_1(%arg0: i32) -> (i32, i32) {
    %c0_i32 = arith.constant 0 : i32
    %c0_i32_0 = arith.constant 0 : i32
    %c0_i32_1 = arith.constant 0 : i32
    return %c0_i32, %c0_i32_0 : i32, i32
  }
  func.func @transform_2(%arg0: i32) -> (i32, i32) {
    %c0_i32 = arith.constant 0 : i32
    %c0_i32_0 = arith.constant 0 : i32
    %c0_i32_1 = arith.constant 0 : i32
    return %c0_i32, %c0_i32_0 : i32, i32
  }
}

</mosaic_0001>

<llo_original>
// kernel: encoder_layer_leaf.1
$region0: #{encoder_layer_leaf.1}
  #allocation0 [shape = 'u32[]', space=smem, size = 0x4, offset = 0x4, fixed_abs, tag = 'smem constant byte address 0x4 - core index']
  #allocation1 [shape = 'u32[144,128]{1,0:T(1,128)}', space=vmem, size = 0x12000, scoped, tag = 'internal scratch']
  %s0 = inlined_call_operand.vmem [shape: f32[32,128], index: 0, kind: input, shape index: {}]
  %s1 = inlined_call_operand.hbm [shape: f32[264,128], index: 1, kind: input, shape index: {}]
  %s2 = inlined_call_operand.hbm [shape: f32[32,128], index: 2, kind: output, shape index: {}]
  %s3 = sld [smem:[#allocation0]]
  $region22: #{encoder_layer_leaf.1} parent=0
    _
  %s5 = ssub.s32 1, %s3
  %s6 = scalar_select 0, %s5, %s3
  $region1: #{encoder_layer_leaf.1} parent=0
    #allocation2 [shape = 'u8[135168]{0}', space=vmem, size = 0x21000, scoped, tag = 'input window, operand 1, single buffered']
    #allocation3 [shape = 's32[1]{0}', space=sflag, size = 0x4, scoped, tag = 'scoped memory for encoder_layer_leaf.1']
    #allocation4 [shape = 's32[1]{0}', space=sflag, size = 0x4, scoped, tag = 'scoped memory for encoder_layer_leaf.1']
    #allocation5 [shape = 'u8[16384]{0}', space=vmem, size = 0x4000, scoped, tag = 'output window, operand 0, single buffered']
    %7 = vsyncpa [#allocation3], 0
    %8 = vsyncpa [#allocation4], 0
    // Predicated region
    $region2: #{encoder_layer_leaf.1} parent=1 // pred_check
      _
    $region3: #{encoder_layer_leaf.1} parent=1 // pred_check_branch
      %10 = sbr.rel (0) target = $region5
    $region4: #{encoder_layer_leaf.1} parent=1 // pred_region
      _
    $region5: #{encoder_layer_leaf.1} parent=1 // pred_fallthru
      _
    // Predicated region
    $region6: #{encoder_layer_leaf.1} parent=1 // pred_check
      _
    $region7: #{encoder_layer_leaf.1} parent=1 // pred_check_branch
      %12 = sbr.rel (0) target = $region9
    $region8: #{encoder_layer_leaf.1} parent=1 // pred_region
      %s14 = ssub.s32 4224, 4224
      %15 = vsyncadd [#allocation3], %s14
      %s16 = sshll.u32 [#allocation2], 4
      %s17 = int_to_ptr.vmem [resolvable:$true] %s16
      %22 = dma.hbm_to_vmem [thread:$0]  %s1, 4224, %s17, [#allocation3], 128, 128, 8
    $region9: #{encoder_layer_leaf.1} parent=1 // pred_fallthru
      _
    // Predicated region
    $region10: #{encoder_layer_leaf.1} parent=1 // pred_check
      _
    $region11: #{encoder_layer_leaf.1} parent=1 // pred_check_branch
      %24 = sbr.rel (0) target = $region13
    $region12: #{encoder_layer_leaf.1} parent=1 // pred_region
      %25 = dma.done [#allocation3], 4224
    $region13: #{encoder_layer_leaf.1} parent=1 // pred_fallthru
      _
    %v26 = vld [vmem:[%s0] sm:$0xff]
    %v27 = vld [vmem:[%s0 + $0x8] sm:$0xff]
    %v28 = vld [vmem:[%s0 + $0x10] sm:$0xff]
    %v29 = vld [vmem:[%s0 + $0x18] sm:$0xff]
    %v30 = vld [vmem:[#allocation2] sm:$0xff]
    %v31 = vld [vmem:[#allocation2 + $0x8] sm:$0xff]
    %v32 = vld [vmem:[#allocation2 + $0x10] sm:$0xff]
    %v33 = vld [vmem:[#allocation2 + $0x18] sm:$0xff]
    %v34 = vld [vmem:[#allocation2 + $0x20] sm:$0xff]
    %v35 = vld [vmem:[#allocation2 + $0x28] sm:$0xff]
    %v36 = vld [vmem:[#allocation2 + $0x30] sm:$0xff]
    %v37 = vld [vmem:[#allocation2 + $0x38] sm:$0xff]
    %v38 = vld [vmem:[#allocation2 + $0x40] sm:$0xff]
    %v39 = vld [vmem:[#allocation2 + $0x48] sm:$0xff]
    %v40 = vld [vmem:[#allocation2 + $0x50] sm:$0xff]
    %v41 = vld [vmem:[#allocation2 + $0x58] sm:$0xff]
    %v42 = vld [vmem:[#allocation2 + $0x60] sm:$0xff]
    %v43 = vld [vmem:[#allocation2 + $0x68] sm:$0xff]
    %v44 = vld [vmem:[#allocation2 + $0x70] sm:$0xff]
    %v45 = vld [vmem:[#allocation2 + $0x78] sm:$0xff]
    %v46 = vld [vmem:[#allocation2 + $0x80] sm:$0xff]
    %v47 = vld [vmem:[#allocation2 + $0x88] sm:$0xff]
    %v48 = vld [vmem:[#allocation2 + $0x90] sm:$0xff]
    %v49 = vld [vmem:[#allocation2 + $0x98] sm:$0xff]
    %v50 = vld [vmem:[#allocation2 + $0xa0] sm:$0xff]
    %v51 = vld [vmem:[#allocation2 + $0xa8] sm:$0xff]
    %v52 = vld [vmem:[#allocation2 + $0xb0] sm:$0xff]
    %v53 = vld [vmem:[#allocation2 + $0xb8] sm:$0xff]
    %v54 = vld [vmem:[#allocation2 + $0xc0] sm:$0xff]
    %v55 = vld [vmem:[#allocation2 + $0xc8] sm:$0xff]
    %v56 = vld [vmem:[#allocation2 + $0xd0] sm:$0xff]
    %v57 = vld [vmem:[#allocation2 + $0xd8] sm:$0xff]
    %v58 = vld [vmem:[#allocation2 + $0xe0] sm:$0xff]
    %v59 = vld [vmem:[#allocation2 + $0xe8] sm:$0xff]
    %v60 = vld [vmem:[#allocation2 + $0xf0] sm:$0xff]
    %v61 = vld [vmem:[#allocation2 + $0xf8] sm:$0xff]
    %v62 = vld [vmem:[#allocation2 + $0x100] sm:$0xff]
    %v63 = vlaneseq
    %v64 = vshrl.u32 %v63, 7
    %v65 = vsub.s32 0, %v64
    %v66 = vrot.slane %v62, %v65
    %67 = vmatprep.subr.mxu0 0.0
    %68 = vmatpush1.msra.mxu0 %v45
    %69 = vmatprep.subr.mxu0 0.0
    %70 = vmatpush1.msra.mxu0 %v44
    %71 = vmatprep.subr.mxu0 0.0
    %72 = vmatpush1.msra.mxu0 %v43
    %73 = vmatprep.subr.mxu0 0.0
    %74 = vmatpush1.msra.mxu0 %v42
    %75 = vmatprep.subr.mxu0 0.0
    %76 = vmatpush1.msra.mxu0 %v41
    %77 = vmatprep.subr.mxu0 0.0
    %78 = vmatpush1.msra.mxu0 %v40
    %79 = vmatprep.subr.mxu0 0.0
    %80 = vmatpush1.msra.mxu0 %v39
    %81 = vmatprep.subr.mxu0 0.0
    %82 = vmatpush1.msra.mxu0 %v38
    %83 = vmatprep.subr.mxu0 0.0
    %84 = vmatpush1.msra.mxu0 %v37
    %85 = vmatprep.subr.mxu0 0.0
    %86 = vmatpush1.msra.mxu0 %v36
    %87 = vmatprep.subr.mxu0 0.0
    %88 = vmatpush1.msra.mxu0 %v35
    %89 = vmatprep.subr.mxu0 0.0
    %90 = vmatpush1.msra.mxu0 %v34
    %91 = vmatprep.subr.mxu0 0.0
    %92 = vmatpush1.msra.mxu0 %v33
    %93 = vmatprep.subr.mxu0 0.0
    %94 = vmatpush1.msra.mxu0 %v32
    %95 = vmatprep.subr.mxu0 0.0
    %96 = vmatpush1.msra.mxu0 %v31
    %97 = vmatprep.subr.mxu0 0.0
    %98 = vmatpush1.msra.mxu0 %v30
    %99 = vmatprep.subr.mxu0 0.0
    %100 = vmatpush2.msra.mxu0 0.0
    %101 = vmatprep.subr.mxu0 0.0
    %102 = vmatpush2.msra.mxu0 0.0
    %103 = vmatprep.subr.mxu0 0.0
    %104 = vmatpush2.msra.mxu0 0.0
    %105 = vmatprep.subr.mxu0 0.0
    %106 = vmatpush2.msra.mxu0 0.0
    %107 = vmatprep.subr.mxu0 0.0
    %108 = vmatpush2.msra.mxu0 0.0
    %109 = vmatprep.subr.mxu0 0.0
    %110 = vmatpush2.msra.mxu0 0.0
    %111 = vmatprep.subr.mxu0 0.0
    %112 = vmatpush2.msra.mxu0 0.0
    %113 = vmatprep.subr.mxu0 0.0
    %114 = vmatpush2.msra.mxu0 0.0
    %115 = vmatprep.subr.mxu0 0.0
    %116 = vmatpush2.msra.mxu0 0.0
    %117 = vmatprep.subr.mxu0 0.0
    %118 = vmatpush2.msra.mxu0 0.0
    %119 = vmatprep.subr.mxu0 0.0
    %120 = vmatpush2.msra.mxu0 0.0
    %121 = vmatprep.subr.mxu0 0.0
    %122 = vmatpush2.msra.mxu0 0.0
    %123 = vmatprep.subr.mxu0 0.0
    %124 = vmatpush2.msra.mxu0 0.0
    %125 = vmatprep.subr.mxu0 0.0
    %126 = vmatpush2.msra.mxu0 0.0
    %127 = vmatprep.subr.mxu0 0.0
    %128 = vmatpush2.msra.mxu0 0.0
    %129 = vmatprep.subr.mxu0 0.0
    %130 = vmatpush2.msra.mxu0 0.0
    %131 = vmatprep.mubr.f32.mxu0 0.0
    %132 = vmatmul.mubr.f32.gmra.mxu0 %v26
    %v133 = vpop.f32.mrf.mxu0
    %v134 = vadd.f32 %v66, %v133
    %v135 = vpop.f32.mrf.mxu0
    %136 = vmatprep.mubr.f32.mxu0 0.0
    %137 = vmatmul.mubr.f32.gmra.mxu0 %v27
    %v138 = vpop.f32.mrf.mxu0
    %v139 = vadd.f32 %v66, %v138
    %v140 = vpop.f32.mrf.mxu0
    %141 = vmatprep.mubr.f32.mxu0 0.0
    %142 = vmatmul.mubr.f32.gmra.mxu0 %v28
    %v143 = vpop.f32.mrf.mxu0
    %v144 = vadd.f32 %v66, %v143
    %v145 = vpop.f32.mrf.mxu0
    %146 = vmatprep.mubr.f32.mxu0 0.0
    %147 = vmatmul.mubr.f32.gmra.mxu0 %v29
    %v148 = vpop.f32.mrf.mxu0
    %v149 = vadd.f32 %v66, %v148
    %v150 = vpop.f32.mrf.mxu0
    %151 = vdwg.mxu0
    %v152 = vadd.f32 %v134, %v139
    %v153 = vadd.f32 %v152, %v144
    %v154 = vadd.f32 %v153, %v149
    %v155 = vrot.slane %v154, 4
    %v156 = vadd.f32 %v154, %v155
    %v157 = vrot.slane %v156, 2
    %v158 = vadd.f32 %v156, %v157
    %v159 = vrot.slane %v158, 1
    %v160 = vadd.f32 %v158, %v159
    %v161 = vmul.f32 %v134, %v134
    %v162 = vmul.f32 %v139, %v139
    %v163 = vmul.f32 %v144, %v144
    %v164 = vmul.f32 %v149, %v149
    %v165 = vadd.f32 %v161, %v162
    %v166 = vadd.f32 %v165, %v163
    %v167 = vadd.f32 %v166, %v164
    %v168 = vrot.slane %v167, 4
    %v169 = vadd.f32 %v167, %v168
    %v170 = vrot.slane %v169, 2
    %v171 = vadd.f32 %v169, %v170
    %v172 = vrot.slane %v171, 1
    %v173 = vadd.f32 %v171, %v172
    %v174 = vmul.f32 %v160, 0.03125
    %v175 = vmul.f32 %v173, 0.03125
    %v176 = vmul.f32 %v174, %v174
    %v177 = vsub.f32 %v175, %v176
    %v178 = vmax.f32 %v177, 0.0
    %v179 = vsub.f32 %v134, %v174
    %v180 = vsub.f32 %v139, %v174
    %v181 = vsub.f32 %v144, %v174
    %v182 = vsub.f32 %v149, %v174
    %v183 = vadd.f32 %v178, 1e-05
    %v184 = vrsqrt.pop %v183
    %v185 = vmul.f32 %v179, %v184
    %v186 = vmul.f32 %v180, %v184
    %v187 = vmul.f32 %v181, %v184
    %v188 = vmul.f32 %v182, %v184
    %v189 = vlaneseq
    %v190 = vshrl.u32 %v189, 7
    %v191 = vsub.s32 1, %v190
    %v192 = vrot.slane %v62, %v191
    %v193 = vmul.f32 %v185, %v192
    %v194 = vmul.f32 %v186, %v192
    %v195 = vmul.f32 %v187, %v192
    %v196 = vmul.f32 %v188, %v192
    %v197 = vlaneseq
    %v198 = vshrl.u32 %v197, 7
    %v199 = vsub.s32 2, %v198
    %v200 = vrot.slane %v62, %v199
    %v201 = vadd.f32 %v193, %v200
    %v202 = vadd.f32 %v194, %v200
    %v203 = vadd.f32 %v195, %v200
    %v204 = vadd.f32 %v196, %v200
    %vm205 = vcmp.gt.f32.partialorder %v201, 0.0
    %vm206 = vcmp.gt.f32.partialorder %v202, 0.0
    %vm207 = vcmp.gt.f32.partialorder %v203, 0.0
    %vm208 = vcmp.gt.f32.partialorder %v204, 0.0
    %v209 = vmul.f32 %v201, 0.005
    %v210 = vmul.f32 %v202, 0.005
    %v211 = vmul.f32 %v203, 0.005
    %v212 = vmul.f32 %v204, 0.005
    %v213 = vsel %vm205, %v201, %v209
    %v214 = vsel %vm206, %v202, %v210
    %v215 = vsel %vm207, %v203, %v211
    %v216 = vsel %vm208, %v204, %v212
    %v217 = vlaneseq
    %v218 = vshrl.u32 %v217, 7
    %v219 = vsub.s32 3, %v218
    %v220 = vrot.slane %v62, %v219
    %221 = vmatprep.subr.mxu0 0.0
    %222 = vmatpush1.msra.mxu0 %v61
    %223 = vmatprep.subr.mxu0 0.0
    %224 = vmatpush1.msra.mxu0 %v60
    %225 = vmatprep.subr.mxu0 0.0
    %226 = vmatpush1.msra.mxu0 %v59
    %227 = vmatprep.subr.mxu0 0.0
    %228 = vmatpush1.msra.mxu0 %v58
    %229 = vmatprep.subr.mxu0 0.0
    %230 = vmatpush1.msra.mxu0 %v57
    %231 = vmatprep.subr.mxu0 0.0
    %232 = vmatpush1.msra.mxu0 %v56
    %233 = vmatprep.subr.mxu0 0.0
    %234 = vmatpush1.msra.mxu0 %v55
    %235 = vmatprep.subr.mxu0 0.0
    %236 = vmatpush1.msra.mxu0 %v54
    %237 = vmatprep.subr.mxu0 0.0
    %238 = vmatpush1.msra.mxu0 %v53
    %239 = vmatprep.subr.mxu0 0.0
    %240 = vmatpush1.msra.mxu0 %v52
    %241 = vmatprep.subr.mxu0 0.0
    %242 = vmatpush1.msra.mxu0 %v51
    %243 = vmatprep.subr.mxu0 0.0
    %244 = vmatpush1.msra.mxu0 %v50
    %245 = vmatprep.subr.mxu0 0.0
    %246 = vmatpush1.msra.mxu0 %v49
    %247 = vmatprep.subr.mxu0 0.0
    %248 = vmatpush1.msra.mxu0 %v48
    %249 = vmatprep.subr.mxu0 0.0
    %250 = vmatpush1.msra.mxu0 %v47
    %251 = vmatprep.subr.mxu0 0.0
    %252 = vmatpush1.msra.mxu0 %v46
    %253 = vmatprep.subr.mxu0 0.0
    %254 = vmatpush2.msra.mxu0 0.0
    %255 = vmatprep.subr.mxu0 0.0
    %256 = vmatpush2.msra.mxu0 0.0
    %257 = vmatprep.subr.mxu0 0.0
    %258 = vmatpush2.msra.mxu0 0.0
    %259 = vmatprep.subr.mxu0 0.0
    %260 = vmatpush2.msra.mxu0 0.0
    %261 = vmatprep.subr.mxu0 0.0
    %262 = vmatpush2.msra.mxu0 0.0
    %263 = vmatprep.subr.mxu0 0.0
    %264 = vmatpush2.msra.mxu0 0.0
    %265 = vmatprep.subr.mxu0 0.0
    %266 = vmatpush2.msra.mxu0 0.0
    %267 = vmatprep.subr.mxu0 0.0
    %268 = vmatpush2.msra.mxu0 0.0
    %269 = vmatprep.subr.mxu0 0.0
    %270 = vmatpush2.msra.mxu0 0.0
    %271 = vmatprep.subr.mxu0 0.0
    %272 = vmatpush2.msra.mxu0 0.0
    %273 = vmatprep.subr.mxu0 0.0
    %274 = vmatpush2.msra.mxu0 0.0
    %275 = vmatprep.subr.mxu0 0.0
    %276 = vmatpush2.msra.mxu0 0.0
    %277 = vmatprep.subr.mxu0 0.0
    %278 = vmatpush2.msra.mxu0 0.0
    %279 = vmatprep.subr.mxu0 0.0
    %280 = vmatpush2.msra.mxu0 0.0
    %281 = vmatprep.subr.mxu0 0.0
    %282 = vmatpush2.msra.mxu0 0.0
    %283 = vmatprep.subr.mxu0 0.0
    %284 = vmatpush2.msra.mxu0 0.0
    %285 = vmatprep.mubr.f32.mxu0 0.0
    %286 = vmatmul.mubr.f32.gmra.mxu0 %v213
    %v287 = vpop.f32.mrf.mxu0
    %v288 = vadd.f32 %v220, %v287
    %v289 = vpop.f32.mrf.mxu0
    %290 = vmatprep.mubr.f32.mxu0 0.0
    %291 = vmatmul.mubr.f32.gmra.mxu0 %v214
    %v292 = vpop.f32.mrf.mxu0
    %v293 = vadd.f32 %v220, %v292
    %v294 = vpop.f32.mrf.mxu0
    %295 = vmatprep.mubr.f32.mxu0 0.0
    %296 = vmatmul.mubr.f32.gmra.mxu0 %v215
    %v297 = vpop.f32.mrf.mxu0
    %v298 = vadd.f32 %v220, %v297
    %v299 = vpop.f32.mrf.mxu0
    %300 = vmatprep.mubr.f32.mxu0 0.0
    %301 = vmatmul.mubr.f32.gmra.mxu0 %v216
    %v302 = vpop.f32.mrf.mxu0
    %v303 = vadd.f32 %v220, %v302
    %v304 = vpop.f32.mrf.mxu0
    %305 = vdwg.mxu0
    %v306 = vadd.f32 %v288, %v293
    %v307 = vadd.f32 %v306, %v298
    %v308 = vadd.f32 %v307, %v303
    %v309 = vrot.slane %v308, 4
    %v310 = vadd.f32 %v308, %v309
    %v311 = vrot.slane %v310, 2
    %v312 = vadd.f32 %v310, %v311
    %v313 = vrot.slane %v312, 1
    %v314 = vadd.f32 %v312, %v313
    %v315 = vmul.f32 %v288, %v288
    %v316 = vmul.f32 %v293, %v293
    %v317 = vmul.f32 %v298, %v298
    %v318 = vmul.f32 %v303, %v303
    %v319 = vadd.f32 %v315, %v316
    %v320 = vadd.f32 %v319, %v317
    %v321 = vadd.f32 %v320, %v318
    %v322 = vrot.slane %v321, 4
    %v323 = vadd.f32 %v321, %v322
    %v324 = vrot.slane %v323, 2
    %v325 = vadd.f32 %v323, %v324
    %v326 = vrot.slane %v325, 1
    %v327 = vadd.f32 %v325, %v326
    %v328 = vmul.f32 %v314, 0.03125
    %v329 = vmul.f32 %v327, 0.03125
    %v330 = vmul.f32 %v328, %v328
    %v331 = vsub.f32 %v329, %v330
    %v332 = vmax.f32 %v331, 0.0
    %v333 = vsub.f32 %v288, %v328
    %v334 = vsub.f32 %v293, %v328
    %v335 = vsub.f32 %v298, %v328
    %v336 = vsub.f32 %v303, %v328
    %v337 = vadd.f32 %v332, 1e-05
    %v338 = vrsqrt.pop %v337
    %v339 = vmul.f32 %v333, %v338
    %v340 = vmul.f32 %v334, %v338
    %v341 = vmul.f32 %v335, %v338
    %v342 = vmul.f32 %v336, %v338
    %v343 = vlaneseq
    %v344 = vshrl.u32 %v343, 7
    %v345 = vsub.s32 4, %v344
    %v346 = vrot.slane %v62, %v345
    %v347 = vmul.f32 %v339, %v346
    %v348 = vmul.f32 %v340, %v346
    %v349 = vmul.f32 %v341, %v346
    %v350 = vmul.f32 %v342, %v346
    %v351 = vlaneseq
    %v352 = vshrl.u32 %v351, 7
    %v353 = vsub.s32 5, %v352
    %v354 = vrot.slane %v62, %v353
    %v355 = vadd.f32 %v347, %v354
    %v356 = vadd.f32 %v348, %v354
    %v357 = vadd.f32 %v349, %v354
    %v358 = vadd.f32 %v350, %v354
    %359 = vst [vmem:[#allocation5] sm:$0xff] %v355
    %360 = vst [vmem:[#allocation5 + $0x8] sm:$0xff] %v356
    %361 = vst [vmem:[#allocation5 + $0x10] sm:$0xff] %v357
    %362 = vst [vmem:[#allocation5 + $0x18] sm:$0xff] %v358
    // Predicated region
    $region14: #{encoder_layer_leaf.1} parent=1 // pred_check
      _
    $region15: #{encoder_layer_leaf.1} parent=1 // pred_check_branch
      %364 = sbr.rel (0) target = $region17
    $region16: #{encoder_layer_leaf.1} parent=1 // pred_region
      %s366 = ssub.s32 512, 512
      %367 = vsyncadd [#allocation4], %s366
      %s368 = sshll.u32 [#allocation5], 4
      %s369 = int_to_ptr.vmem [resolvable:$true] %s368
      %374 = dma.vmem_to_hbm [thread:$0]  %s369, 512, %s2, [#allocation4], 128, 128, 8
    $region17: #{encoder_layer_leaf.1} parent=1 // pred_fallthru
      _
    // Predicated region
    $region18: #{encoder_layer_leaf.1} parent=1 // pred_check
      _
    $region19: #{encoder_layer_leaf.1} parent=1 // pred_check_branch
      %376 = sbr.rel (0) target = $region21
    $region20: #{encoder_layer_leaf.1} parent=1 // pred_region
      %377 = dma.done [#allocation4], 512
    $region21: #{encoder_layer_leaf.1} parent=1 // pred_fallthru
      _
    %378 = vsyncpa [#allocation3], 1
    %379 = vsyncpa [#allocation4], 1

</llo_original>
